<compile_context>
chip_gen: v5e
topology: v5e:2x2
jax: 0.10.0
libtpu: 0.0.40
codegen_flags: <defaults>
</compile_context>

<pallas_src>
import functools

import jax
import jax.numpy as jnp
import numpy as np
from jax.experimental import pallas as pl
from jax.experimental.pallas import tpu as pltpu


def _round_up(x, m):
    return (x + m - 1) // m * m


def _make_anfis_kernel(num_rules, input_dim, membership_via_mxu):
    """Build the ANFIS forward kernel.

    membership_via_mxu=False (default for small D): exact subtract-then-square
        membership and consequent, D statically-unrolled VPU FMAs at the true
        rule width R (no lane padding anywhere), a single exp, no prod, no MXU.
    membership_via_mxu=True (opt-in, for large D/R): q expanded to
        x^2 @ wT - x @ (2aw)T + sum_d a^2 w as two (T,D)x(D,R_pad) MXU matmuls
        plus one exp.  Constants are rule-padded to 128 lanes on the host with
        sumsq padding = +1e30 so exp(-q)=0 on padding lanes (no in-kernel mask).
    """
    r, d = num_rules, input_dim

    if membership_via_mxu:

        def kernel(x_ref, wT_ref, aw2T_ref, sumsq_ref, cwT_ref, cb_ref, out_ref):
            x = x_ref[...]                                      # (T, D) f32
            q = (jnp.dot(x * x, wT_ref[...], preferred_element_type=jnp.float32)
                 - jnp.dot(x, aw2T_ref[...], preferred_element_type=jnp.float32)
                 + sumsq_ref[...])                              # (T, R_pad)
            strengths = jnp.exp(-q)                             # padding lanes -> 0
            s_sum = jnp.sum(strengths, axis=1, keepdims=True)   # (T, 1)
            # Exact reciprocal, hoisted once and reused for norm and pred.
            inv = pl.reciprocal(s_sum + 1e-8)
            norm = strengths * inv
            rule_out = jnp.dot(x, cwT_ref[...],
                               preferred_element_type=jnp.float32) + cb_ref[...]
            pred = jnp.sum(norm * rule_out, axis=1, keepdims=True)
            # Packed narrow output: [ s | ns | pred ].
            out_ref[:, 0:r] = strengths[:, :r]
            out_ref[:, r:2 * r] = norm[:, :r]
            out_ref[:, 2 * r:2 * r + 1] = pred

    else:

        def kernel(x_ref, wT_ref, aT_ref, cwT_ref, cb_ref, out_ref):
            x = x_ref[...]                                      # (T, D) f32
            t = x.shape[0]
            wt = wT_ref[...]                                    # (D, R)
            at = aT_ref[...]                                    # (D, R)
            cwt = cwT_ref[...]                                  # (D, R)
            q = jnp.zeros((t, r), jnp.float32)
            rule_out = jnp.broadcast_to(cb_ref[...], (t, r))    # (T, R)
            for dd in range(d):                                 # static unroll
                xcol = x[:, dd:dd + 1]                          # (T, 1)
                diff = xcol - at[dd:dd + 1, :]                  # (T, R)
                q = q + diff * diff * wt[dd:dd + 1, :]
                rule_out = rule_out + xcol * cwt[dd:dd + 1, :]
            strengths = jnp.exp(-q)                             # single exp (EUP)
            s_sum = jnp.sum(strengths, axis=1, keepdims=True)
            inv = pl.reciprocal(s_sum + 1e-8)
            norm = strengths * inv
            pred = jnp.sum(norm * rule_out, axis=1, keepdims=True)
            out_ref[:, 0:r] = strengths
            out_ref[:, r:2 * r] = norm
            out_ref[:, 2 * r:2 * r + 1] = pred

    return kernel


@functools.partial(jax.jit, static_argnames=("membership_via_mxu", "tile_n"))
def anfis_forward(x, a, b, cw, cb, *, membership_via_mxu=None, tile_n=None):
    """x: (N, D); a, b, cw: (R, D); cb: (R,).
    Returns (pred (N,), strengths (N, R), normalized_strengths (N, R))."""
    x = x.astype(jnp.float32)
    n, d = x.shape
    r = a.shape[0]

    # Exact VPU path for small D (no re-association error, MXU would be idle
    # anyway); reserve the expanded-quadratic MXU path for large D/R.
    if membership_via_mxu is None:
        membership_via_mxu = d > 16

    # Dominant perf lever: big batch tiles amortize the ~0.35 us/step overhead.
    # ~4 KiB/row of pipeline+live VMEM (see header) -> 2048 rows ~ 8 MiB.
    if tile_n is None:
        tile_n = min(2048, _round_up(n, 8))
    tile_n = _round_up(tile_n, 8)
    n_pad = _round_up(n, tile_n)

    # ---- parameter-derived constants, computed once outside the kernel ----
    a32 = a.astype(jnp.float32)
    b32 = jnp.maximum(b.astype(jnp.float32), 1e-8)            # clamp(b, min=1e-8)
    w = 1.0 / (2.0 * b32 * b32)                               # 1/(2 b^2)   (R, D)
    cw32 = cw.astype(jnp.float32)
    cb32 = cb.astype(jnp.float32)

    x_p = jnp.pad(x, ((0, n_pad - n), (0, 0)))

    spec_x = pl.BlockSpec((tile_n, d), lambda i: (i, 0))

    if membership_via_mxu:
        # Rule axis padded to 128 lanes for dense MXU matmuls; mask folded
        # into sumsq padding (+1e30 -> exp(-q) = 0 on padding lanes).
        r_pad = _round_up(r, 128)

        def pad_rules_T(m):      # (R, D) -> (D, R_pad)
            return jnp.pad(m, ((0, r_pad - r), (0, 0))).T

        wT = pad_rules_T(w)
        aw2T = pad_rules_T(2.0 * a32 * w)
        cwT = pad_rules_T(cw32)
        sumsq_row = jnp.pad(jnp.sum(a32 * a32 * w, axis=1).reshape(1, r),
                            ((0, 0), (0, r_pad - r)), constant_values=1e30)
        cb_row = jnp.pad(cb32.reshape(1, r), ((0, 0), (0, r_pad - r)))

        spec_dr = pl.BlockSpec((d, r_pad), lambda i: (0, 0))   # shared across tiles
        spec_1r = pl.BlockSpec((1, r_pad), lambda i: (0, 0))
        args = (x_p, wT, aw2T, sumsq_row, cwT, cb_row)
        in_specs = [spec_x, spec_dr, spec_dr, spec_1r, spec_dr, spec_1r]
    else:
        # Narrow constants at the true rule width R; only what this path uses.
        wT = w.T                                               # (D, R)
        aT = a32.T
        cwT = cw32.T
        cb_row = cb32.reshape(1, r)

        spec_dr = pl.BlockSpec((d, r), lambda i: (0, 0))
        spec_1r = pl.BlockSpec((1, r), lambda i: (0, 0))
        args = (x_p, wT, aT, cwT, cb_row)
        in_specs = [spec_x, spec_dr, spec_dr, spec_dr, spec_1r]

    out_w = 2 * r + 1                                          # [ s | ns | pred ]
    out = pl.pallas_call(
        _make_anfis_kernel(r, d, membership_via_mxu),
        out_shape=jax.ShapeDtypeStruct((n_pad, out_w), jnp.float32),
        grid=(n_pad // tile_n,),
        in_specs=in_specs,
        out_specs=pl.BlockSpec((tile_n, out_w), lambda i: (i, 0)),
        compiler_params=pltpu.CompilerParams(
            # Batch axis is embarrassingly parallel -> shard grid steps across
            # TensorCores on v7x; no-op on v5e/v6e.
            dimension_semantics=("parallel",),
            # Headroom for the tile_n sweep (<= v7x's 64 MiB physical VMEM).
            vmem_limit_bytes=48 << 20,
        ),
    )(*args)

    pred = out[:n, 2 * r]
    s = out[:n, 0:r]
    ns = out[:n, r:2 * r]
    return pred, s, ns


def _reference(x, a, b, cw, cb):
    """Pure NumPy (float64) reference matching the PyTorch module forward."""
    x, a, b, cw, cb = (np.asarray(v, dtype=np.float64) for v in (x, a, b, cw, cb))
    b = np.maximum(b, 1e-8)
    diff = x[:, None, :] - a[None, :, :]
    memb = np.exp(-(diff ** 2) / (2.0 * b ** 2)[None, :, :])
    s = np.prod(memb, axis=-1)
    ns = s / (np.sum(s, axis=1, keepdims=True) + 1e-8)
    pred = np.sum(ns * (x @ cw.T + cb[None, :]), axis=1)
    return pred, s, ns


if __name__ == "__main__":
    input_dim, num_rules, batch = 4, 8, 16

    key = jax.random.PRNGKey(0)
    kx, ka, kb, kc = jax.random.split(key, 4)
    x = jax.random.normal(kx, (batch, input_dim), dtype=jnp.float32)
    # Parameter shapes follow the module __init__ (a: D, b: D>0, c: D+1 per rule).
    a = jax.random.normal(ka, (num_rules, input_dim), dtype=jnp.float32)
    b = jnp.abs(jax.random.normal(kb, (num_rules, input_dim), dtype=jnp.float32))
    c = jax.random.normal(kc, (num_rules, input_dim + 1), dtype=jnp.float32) * 0.1
    cw, cb = c[:, :-1], c[:, -1]

    ref_pred, ref_s, ref_ns = _reference(x, a, b, cw, cb)

    # 1) Default path (exact VPU membership): must match the PyTorch math to 1e-5.
    pred, s, ns = anfis_forward(x, a, b, cw, cb)
    jax.block_until_ready((pred, s, ns))
    assert pred.shape == (batch,)
    assert s.shape == (batch, num_rules) and ns.shape == (batch, num_rules)
    np.testing.assert_allclose(np.asarray(pred), ref_pred, rtol=1e-5, atol=1e-5)
    np.testing.assert_allclose(np.asarray(s), ref_s, rtol=1e-5, atol=1e-5)
    np.testing.assert_allclose(np.asarray(ns), ref_ns, rtol=1e-5, atol=1e-5)

    # 2) Multi-step grid + batch padding (batch not a multiple of tile_n).
    batch2 = 300
    x2 = jax.random.normal(kx, (batch2, input_dim), dtype=jnp.float32)
    ref2 = _reference(x2, a, b, cw, cb)
    out2 = anfis_forward(x2, a, b, cw, cb, tile_n=128)
    jax.block_until_ready(out2)
    for got, want in zip(out2, ref2):
        np.testing.assert_allclose(np.asarray(got), want, rtol=1e-5, atol=1e-5)

    # 3) Opt-in MXU-expanded membership path (same math, reassociated —
    #    allow for f32 cancellation in the expanded quadratic).
    pred3, s3, ns3 = anfis_forward(x, a, b, cw, cb, membership_via_mxu=True)
    jax.block_until_ready((pred3, s3, ns3))
    np.testing.assert_allclose(np.asarray(s3), ref_s, rtol=1e-2, atol=1e-3)
    np.testing.assert_allclose(np.asarray(ns3), ref_ns, rtol=1e-2, atol=1e-3)
    np.testing.assert_allclose(np.asarray(pred3), ref_pred, rtol=1e-2, atol=1e-3)

    print("KERNEL_OK")
</pallas_src>

<mosaic_0001>
module attributes {stable_mosaic.version = 11 : i64} {
  func.func @kernel(%arg0: i32, %arg1: memref<16x4xf32, #tpu.memory_space<vmem>>, %arg2: memref<4x8xf32, #tpu.memory_space<vmem>>, %arg3: memref<4x8xf32, #tpu.memory_space<vmem>>, %arg4: memref<4x8xf32, #tpu.memory_space<vmem>>, %arg5: memref<1x8xf32, #tpu.memory_space<vmem>>, %arg6: memref<16x17xf32, #tpu.memory_space<vmem>>) attributes {dimension_semantics = [#tpu.dimension_semantics<parallel>], iteration_bounds = array<i64: 1>, scalar_prefetch = 0 : i64, scratch_operands = 0 : i64, tpu.core_type = #tpu.core_type<tc>, window_params = [{transform_indices = @transform_0, window_bounds = array<i64: 16, 4>}, {pipeline_mode = #tpu.pipeline_mode<synchronous>, transform_indices = @transform_1, window_bounds = array<i64: 4, 8>}, {pipeline_mode = #tpu.pipeline_mode<synchronous>, transform_indices = @transform_2, window_bounds = array<i64: 4, 8>}, {pipeline_mode = #tpu.pipeline_mode<synchronous>, transform_indices = @transform_3, window_bounds = array<i64: 4, 8>}, {pipeline_mode = #tpu.pipeline_mode<synchronous>, transform_indices = @transform_4, window_bounds = array<i64: 1, 8>}, {transform_indices = @transform_5, window_bounds = array<i64: 16, 17>}]} {
    %c0 = arith.constant 0 : index
    %c0_0 = arith.constant 0 : index
    %0 = vector.load %arg1[%c0, %c0_0] : memref<16x4xf32, #tpu.memory_space<vmem>>, vector<16x4xf32>
    %c0_1 = arith.constant 0 : index
    %c0_2 = arith.constant 0 : index
    %1 = vector.load %arg2[%c0_1, %c0_2] : memref<4x8xf32, #tpu.memory_space<vmem>>, vector<4x8xf32>
    %c0_3 = arith.constant 0 : index
    %c0_4 = arith.constant 0 : index
    %2 = vector.load %arg3[%c0_3, %c0_4] : memref<4x8xf32, #tpu.memory_space<vmem>>, vector<4x8xf32>
    %c0_5 = arith.constant 0 : index
    %c0_6 = arith.constant 0 : index
    %3 = vector.load %arg4[%c0_5, %c0_6] : memref<4x8xf32, #tpu.memory_space<vmem>>, vector<4x8xf32>
    %cst = arith.constant 0.000000e+00 : f32
    %4 = vector.broadcast %cst : f32 to vector<16x8xf32>
    %c0_7 = arith.constant 0 : index
    %c0_8 = arith.constant 0 : index
    %5 = vector.load %arg5[%c0_7, %c0_8] : memref<1x8xf32, #tpu.memory_space<vmem>>, vector<1x8xf32>
    %6 = vector.shape_cast %5 : vector<1x8xf32> to vector<1x8xf32>
    %7 = vector.broadcast %6 : vector<1x8xf32> to vector<16x8xf32>
    %8 = vector.extract_strided_slice %0 {offsets = [0, 0], sizes = [16, 1], strides = [1, 1]} : vector<16x4xf32> to vector<16x1xf32>
    %9 = vector.extract_strided_slice %2 {offsets = [0, 0], sizes = [1, 8], strides = [1, 1]} : vector<4x8xf32> to vector<1x8xf32>
    %10 = vector.broadcast %8 : vector<16x1xf32> to vector<16x8xf32>
    %11 = vector.broadcast %9 : vector<1x8xf32> to vector<16x8xf32>
    %12 = arith.subf %10, %11 : vector<16x8xf32>
    %13 = arith.mulf %12, %12 : vector<16x8xf32>
    %14 = vector.extract_strided_slice %1 {offsets = [0, 0], sizes = [1, 8], strides = [1, 1]} : vector<4x8xf32> to vector<1x8xf32>
    %15 = vector.broadcast %14 : vector<1x8xf32> to vector<16x8xf32>
    %16 = arith.mulf %13, %15 : vector<16x8xf32>
    %17 = arith.addf %4, %16 : vector<16x8xf32>
    %18 = vector.extract_strided_slice %3 {offsets = [0, 0], sizes = [1, 8], strides = [1, 1]} : vector<4x8xf32> to vector<1x8xf32>
    %19 = vector.broadcast %8 : vector<16x1xf32> to vector<16x8xf32>
    %20 = vector.broadcast %18 : vector<1x8xf32> to vector<16x8xf32>
    %21 = arith.mulf %19, %20 : vector<16x8xf32>
    %22 = arith.addf %7, %21 : vector<16x8xf32>
    %23 = vector.extract_strided_slice %0 {offsets = [0, 1], sizes = [16, 1], strides = [1, 1]} : vector<16x4xf32> to vector<16x1xf32>
    %24 = vector.extract_strided_slice %2 {offsets = [1, 0], sizes = [1, 8], strides = [1, 1]} : vector<4x8xf32> to vector<1x8xf32>
    %25 = vector.broadcast %23 : vector<16x1xf32> to vector<16x8xf32>
    %26 = vector.broadcast %24 : vector<1x8xf32> to vector<16x8xf32>
    %27 = arith.subf %25, %26 : vector<16x8xf32>
    %28 = arith.mulf %27, %27 : vector<16x8xf32>
    %29 = vector.extract_strided_slice %1 {offsets = [1, 0], sizes = [1, 8], strides = [1, 1]} : vector<4x8xf32> to vector<1x8xf32>
    %30 = vector.broadcast %29 : vector<1x8xf32> to vector<16x8xf32>
    %31 = arith.mulf %28, %30 : vector<16x8xf32>
    %32 = arith.addf %17, %31 : vector<16x8xf32>
    %33 = vector.extract_strided_slice %3 {offsets = [1, 0], sizes = [1, 8], strides = [1, 1]} : vector<4x8xf32> to vector<1x8xf32>
    %34 = vector.broadcast %23 : vector<16x1xf32> to vector<16x8xf32>
    %35 = vector.broadcast %33 : vector<1x8xf32> to vector<16x8xf32>
    %36 = arith.mulf %34, %35 : vector<16x8xf32>
    %37 = arith.addf %22, %36 : vector<16x8xf32>
    %38 = vector.extract_strided_slice %0 {offsets = [0, 2], sizes = [16, 1], strides = [1, 1]} : vector<16x4xf32> to vector<16x1xf32>
    %39 = vector.extract_strided_slice %2 {offsets = [2, 0], sizes = [1, 8], strides = [1, 1]} : vector<4x8xf32> to vector<1x8xf32>
    %40 = vector.broadcast %38 : vector<16x1xf32> to vector<16x8xf32>
    %41 = vector.broadcast %39 : vector<1x8xf32> to vector<16x8xf32>
    %42 = arith.subf %40, %41 : vector<16x8xf32>
    %43 = arith.mulf %42, %42 : vector<16x8xf32>
    %44 = vector.extract_strided_slice %1 {offsets = [2, 0], sizes = [1, 8], strides = [1, 1]} : vector<4x8xf32> to vector<1x8xf32>
    %45 = vector.broadcast %44 : vector<1x8xf32> to vector<16x8xf32>
    %46 = arith.mulf %43, %45 : vector<16x8xf32>
    %47 = arith.addf %32, %46 : vector<16x8xf32>
    %48 = vector.extract_strided_slice %3 {offsets = [2, 0], sizes = [1, 8], strides = [1, 1]} : vector<4x8xf32> to vector<1x8xf32>
    %49 = vector.broadcast %38 : vector<16x1xf32> to vector<16x8xf32>
    %50 = vector.broadcast %48 : vector<1x8xf32> to vector<16x8xf32>
    %51 = arith.mulf %49, %50 : vector<16x8xf32>
    %52 = arith.addf %37, %51 : vector<16x8xf32>
    %53 = vector.extract_strided_slice %0 {offsets = [0, 3], sizes = [16, 1], strides = [1, 1]} : vector<16x4xf32> to vector<16x1xf32>
    %54 = vector.extract_strided_slice %2 {offsets = [3, 0], sizes = [1, 8], strides = [1, 1]} : vector<4x8xf32> to vector<1x8xf32>
    %55 = vector.broadcast %53 : vector<16x1xf32> to vector<16x8xf32>
    %56 = vector.broadcast %54 : vector<1x8xf32> to vector<16x8xf32>
    %57 = arith.subf %55, %56 : vector<16x8xf32>
    %58 = arith.mulf %57, %57 : vector<16x8xf32>
    %59 = vector.extract_strided_slice %1 {offsets = [3, 0], sizes = [1, 8], strides = [1, 1]} : vector<4x8xf32> to vector<1x8xf32>
    %60 = vector.broadcast %59 : vector<1x8xf32> to vector<16x8xf32>
    %61 = arith.mulf %58, %60 : vector<16x8xf32>
    %62 = arith.addf %47, %61 : vector<16x8xf32>
    %63 = vector.extract_strided_slice %3 {offsets = [3, 0], sizes = [1, 8], strides = [1, 1]} : vector<4x8xf32> to vector<1x8xf32>
    %64 = vector.broadcast %53 : vector<16x1xf32> to vector<16x8xf32>
    %65 = vector.broadcast %63 : vector<1x8xf32> to vector<16x8xf32>
    %66 = arith.mulf %64, %65 : vector<16x8xf32>
    %67 = arith.addf %52, %66 : vector<16x8xf32>
    %cst_9 = arith.constant 0.000000e+00 : f32
    %68 = vector.broadcast %cst_9 : f32 to vector<16x8xf32>
    %69 = arith.subf %68, %62 : vector<16x8xf32>
    %70 = math.exp %69 : vector<16x8xf32>
    %cst_10 = arith.constant dense<0.000000e+00> : vector<16xf32>
    %71 = vector.multi_reduction <add>, %70, %cst_10 [1] : vector<16x8xf32> to vector<16xf32>
    %72 = vector.shape_cast %71 : vector<16xf32> to vector<16x1xf32>
    %cst_11 = arith.constant 9.99999993E-9 : f32
    %73 = vector.broadcast %cst_11 : f32 to vector<16x1xf32>
    %74 = arith.addf %72, %73 : vector<16x1xf32>
    %75 = tpu.reciprocal %74 : vector<16x1xf32> -> vector<16x1xf32>
    %76 = vector.broadcast %75 : vector<16x1xf32> to vector<16x8xf32>
    %77 = arith.mulf %70, %76 : vector<16x8xf32>
    %78 = arith.mulf %77, %67 : vector<16x8xf32>
    %cst_12 = arith.constant dense<0.000000e+00> : vector<16xf32>
    %79 = vector.multi_reduction <add>, %78, %cst_12 [1] : vector<16x8xf32> to vector<16xf32>
    %80 = vector.shape_cast %79 : vector<16xf32> to vector<16x1xf32>
    %c0_13 = arith.constant 0 : index
    %c0_14 = arith.constant 0 : index
    %81 = vector.load %arg6[%c0_13, %c0_14] : memref<16x17xf32, #tpu.memory_space<vmem>>, vector<16x8xf32>
    tpu.vector_store %arg6[%c0_13, %c0_14], %70 {strides = array<i32>} : memref<16x17xf32, #tpu.memory_space<vmem>>, vector<16x8xf32>,
    %c0_15 = arith.constant 0 : index
    %c8 = arith.constant 8 : index
    %82 = vector.load %arg6[%c0_15, %c8] : memref<16x17xf32, #tpu.memory_space<vmem>>, vector<16x8xf32>
    tpu.vector_store %arg6[%c0_15, %c8], %77 {strides = array<i32>} : memref<16x17xf32, #tpu.memory_space<vmem>>, vector<16x8xf32>,
    %c0_16 = arith.constant 0 : index
    %c16 = arith.constant 16 : index
    %83 = vector.load %arg6[%c0_16, %c16] : memref<16x17xf32, #tpu.memory_space<vmem>>, vector<16x1xf32>
    tpu.vector_store %arg6[%c0_16, %c16], %80 {strides = array<i32>} : memref<16x17xf32, #tpu.memory_space<vmem>>, vector<16x1xf32>,
    return
  }
  func.func @transform_0(%arg0: i32) -> (i32, i32) {
    %c0_i32 = arith.constant 0 : i32
    %c0_i32_0 = arith.constant 0 : i32
    return %arg0, %c0_i32 : i32, i32
  }
  func.func @transform_1(%arg0: i32) -> (i32, i32) {
    %c0_i32 = arith.constant 0 : i32
    %c0_i32_0 = arith.constant 0 : i32
    %c0_i32_1 = arith.constant 0 : i32
    return %c0_i32, %c0_i32_0 : i32, i32
  }
  func.func @transform_2(%arg0: i32) -> (i32, i32) {
    %c0_i32 = arith.constant 0 : i32
    %c0_i32_0 = arith.constant 0 : i32
    %c0_i32_1 = arith.constant 0 : i32
    return %c0_i32, %c0_i32_0 : i32, i32
  }
  func.func @transform_3(%arg0: i32) -> (i32, i32) {
    %c0_i32 = arith.constant 0 : i32
    %c0_i32_0 = arith.constant 0 : i32
    %c0_i32_1 = arith.constant 0 : i32
    return %c0_i32, %c0_i32_0 : i32, i32
  }
  func.func @transform_4(%arg0: i32) -> (i32, i32) {
    %c0_i32 = arith.constant 0 : i32
    %c0_i32_0 = arith.constant 0 : i32
    %c0_i32_1 = arith.constant 0 : i32
    return %c0_i32, %c0_i32_0 : i32, i32
  }
  func.func @transform_5(%arg0: i32) -> (i32, i32) {
    %c0_i32 = arith.constant 0 : i32
    %c0_i32_0 = arith.constant 0 : i32
    return %arg0, %c0_i32 : i32, i32
  }
}

</mosaic_0001>

<llo_original>
// kernel: anfis_forward.1
$region0: #{anfis_forward.1}
  #allocation0 [shape = 'u32[]', space=smem, size = 0x4, offset = 0x4, fixed_abs, tag = 'smem constant byte address 0x4 - core index']
  #allocation1 [shape = 'u32[72,128]{1,0:T(1,128)}', space=vmem, size = 0x9000, scoped, tag = 'internal scratch']
  %s0 = inlined_call_operand.vmem [shape: f32[16,4], index: 0, kind: input, shape index: {}]
  %s1 = inlined_call_operand.vmem [shape: f32[4,8], index: 1, kind: input, shape index: {}]
  %s2 = inlined_call_operand.vmem [shape: f32[4,8], index: 2, kind: input, shape index: {}]
  %s3 = inlined_call_operand.vmem [shape: f32[4,8], index: 3, kind: input, shape index: {}]
  %s4 = inlined_call_operand.vmem [shape: f32[1,8], index: 4, kind: input, shape index: {}]
  %s5 = inlined_call_operand.vmem [shape: f32[16,17], index: 5, kind: output, shape index: {}]
  %s6 = sld [smem:[#allocation0]]
  $region30: #{anfis_forward.1} parent=0
    _
  %s8 = ssub.s32 1, %s6
  %s9 = scalar_select 0, %s8, %s6
  // Predicated region
  $region2: #{anfis_forward.1} parent=0 // pred_check
    _
  $region3: #{anfis_forward.1} parent=0 // pred_check_branch
    %11 = sbr.rel (0) target = $region5
  $region4: #{anfis_forward.1} parent=0 // pred_region
    _
  $region5: #{anfis_forward.1} parent=0 // pred_fallthru
    _
  // Predicated region
  $region6: #{anfis_forward.1} parent=0 // pred_check
    _
  $region7: #{anfis_forward.1} parent=0 // pred_check_branch
    %13 = sbr.rel (0) target = $region9
  $region8: #{anfis_forward.1} parent=0 // pred_region
    _
  $region9: #{anfis_forward.1} parent=0 // pred_fallthru
    _
  // Predicated region
  $region10: #{anfis_forward.1} parent=0 // pred_check
    _
  $region11: #{anfis_forward.1} parent=0 // pred_check_branch
    %15 = sbr.rel (0) target = $region13
  $region12: #{anfis_forward.1} parent=0 // pred_region
    _
  $region13: #{anfis_forward.1} parent=0 // pred_fallthru
    _
  // Predicated region
  $region14: #{anfis_forward.1} parent=0 // pred_check
    _
  $region15: #{anfis_forward.1} parent=0 // pred_check_branch
    %17 = sbr.rel (0) target = $region17
  $region16: #{anfis_forward.1} parent=0 // pred_region
    _
  $region17: #{anfis_forward.1} parent=0 // pred_fallthru
    _
  // Predicated region
  $region18: #{anfis_forward.1} parent=0 // pred_check
    _
  $region19: #{anfis_forward.1} parent=0 // pred_check_branch
    %19 = sbr.rel (0) target = $region21
  $region20: #{anfis_forward.1} parent=0 // pred_region
    _
  $region21: #{anfis_forward.1} parent=0 // pred_fallthru
    _
  %v20 = vld [vmem:[%s0] sm:$0xff]
  %v21 = vld [vmem:[%s0 + $0x8] sm:$0xff]
  %v22 = vld [vmem:[%s1] sm:$0xf]
  %v23 = vld [vmem:[%s2] sm:$0xf]
  %v24 = vld [vmem:[%s3] sm:$0xf]
  %v25 = vld [vmem:[%s4] sm:$0x1]
  %v27 = vperm.slane %v25, 0
  %30 = vset.pattern.permute.xlu0 0
  %31 = vperm.xlu0 %30, %v20
  %v32 = vpop.permute.xlu0 %31
  %35 = vset.pattern.permute.xlu0 0
  %36 = vperm.xlu0 %35, %v21
  %v37 = vpop.permute.xlu0 %36
  %v39 = vperm.slane %v23, 0
  %v40 = vsub.f32 %v32, %v39
  %v41 = vsub.f32 %v37, %v39
  %v42 = vmul.f32 %v40, %v40
  %v43 = vmul.f32 %v41, %v41
  %v44 = vperm.slane %v22, 0
  %v45 = vmul.f32 %v42, %v44
  %v46 = vmul.f32 %v43, %v44
  %v47 = vadd.f32 %v45, 0.0
  %v48 = vadd.f32 %v46, 0.0
  %v49 = vperm.slane %v24, 0
  %v50 = vmul.f32 %v32, %v49
  %v51 = vmul.f32 %v37, %v49
  %v52 = vadd.f32 %v27, %v50
  %v53 = vadd.f32 %v27, %v51
  %54 = vset.pattern.permute.xlu0 1
  %55 = vperm.xlu0 %54, %v20
  %v56 = vpop.permute.xlu0 %55
  %58 = vset.pattern.permute.xlu0 1
  %59 = vperm.xlu0 %58, %v21
  %v60 = vpop.permute.xlu0 %59
  %v62 = vperm.slane %v23, 1
  %v63 = vsub.f32 %v56, %v62
  %v64 = vsub.f32 %v60, %v62
  %v65 = vmul.f32 %v63, %v63
  %v66 = vmul.f32 %v64, %v64
  %v67 = vperm.slane %v22, 1
  %v68 = vmul.f32 %v65, %v67
  %v69 = vmul.f32 %v66, %v67
  %v70 = vadd.f32 %v47, %v68
  %v71 = vadd.f32 %v48, %v69
  %v72 = vperm.slane %v24, 1
  %v73 = vmul.f32 %v56, %v72
  %v74 = vmul.f32 %v60, %v72
  %v75 = vadd.f32 %v52, %v73
  %v76 = vadd.f32 %v53, %v74
  %77 = vset.pattern.permute.xlu0 2
  %78 = vperm.xlu0 %77, %v20
  %v79 = vpop.permute.xlu0 %78
  %81 = vset.pattern.permute.xlu0 2
  %82 = vperm.xlu0 %81, %v21
  %v83 = vpop.permute.xlu0 %82
  %v85 = vperm.slane %v23, 2
  %v86 = vsub.f32 %v79, %v85
  %v87 = vsub.f32 %v83, %v85
  %v88 = vmul.f32 %v86, %v86
  %v89 = vmul.f32 %v87, %v87
  %v90 = vperm.slane %v22, 2
  %v91 = vmul.f32 %v88, %v90
  %v92 = vmul.f32 %v89, %v90
  %v93 = vadd.f32 %v70, %v91
  %v94 = vadd.f32 %v71, %v92
  %v95 = vperm.slane %v24, 2
  %v96 = vmul.f32 %v79, %v95
  %v97 = vmul.f32 %v83, %v95
  %v98 = vadd.f32 %v75, %v96
  %v99 = vadd.f32 %v76, %v97
  %100 = vset.pattern.permute.xlu0 3
  %101 = vperm.xlu0 %100, %v20
  %v102 = vpop.permute.xlu0 %101
  %104 = vset.pattern.permute.xlu0 3
  %105 = vperm.xlu0 %104, %v21
  %v106 = vpop.permute.xlu0 %105
  %v108 = vperm.slane %v23, 3
  %v109 = vsub.f32 %v102, %v108
  %v110 = vsub.f32 %v106, %v108
  %v111 = vmul.f32 %v109, %v109
  %v112 = vmul.f32 %v110, %v110
  %v113 = vperm.slane %v22, 3
  %v114 = vmul.f32 %v111, %v113
  %v115 = vmul.f32 %v112, %v113
  %v116 = vadd.f32 %v93, %v114
  %v117 = vadd.f32 %v94, %v115
  %v118 = vperm.slane %v24, 3
  %v119 = vmul.f32 %v102, %v118
  %v120 = vmul.f32 %v106, %v118
  %v121 = vadd.f32 %v98, %v119
  %v122 = vadd.f32 %v99, %v120
  %v123 = vsub.f32 0.0, %v116
  %v124 = vsub.f32 0.0, %v117
  %v125 = vmul.f32 %v123, 1.442695
  %v126 = vpow.pop %v125
  %v127 = vmul.f32 %v124, 1.442695
  %v128 = vpow.pop %v127
  %vm129 = vcmask 64512
  %v130 = vsel %vm129, %v126, 0.0
  %131 = vadd.xlane.f32.xlu0 %v130
  %v132 = vpop.xlane.xlu0 %131
  %v133 = vsel %vm129, %v128, 0.0
  %134 = vadd.xlane.f32.xlu0 %v133
  %v135 = vpop.xlane.xlu0 %134
  %v136 = vadd.f32 %v132, 1e-08
  %v137 = vadd.f32 %v135, 1e-08
  %v138 = vrcp.pop %v136
  %v139 = vmul.f32 %v136, %v138
  %v140 = vsub.f32 1.0, %v139
  %v141 = vmul.f32 %v138, %v140
  %v142 = vadd.f32 %v138, %v141
  %vm143 = vweird.f32 %v136
  %vm144 = vweird.f32 %v138
  %vm145 = vmor %vm143, %vm144
  %v146 = vsel %vm145, %v138, %v142
  %v147 = vand.u32 2147483647, %v136
  %vm148 = vcmp.eq.f32.partialorder %v147, 8.507059e+37
  %v149 = vand.u32 %v136, 2147483648
  %v150 = vor.u32 1.1754944e-38, %v149
  %v151 = vsel %vm148, %v150, %v146
  %v152 = vrcp.pop %v137
  %v153 = vmul.f32 %v137, %v152
  %v154 = vsub.f32 1.0, %v153
  %v155 = vmul.f32 %v152, %v154
  %v156 = vadd.f32 %v152, %v155
  %vm157 = vweird.f32 %v137
  %vm158 = vweird.f32 %v152
  %vm159 = vmor %vm157, %vm158
  %v160 = vsel %vm159, %v152, %v156
  %v161 = vand.u32 2147483647, %v137
  %vm162 = vcmp.eq.f32.partialorder %v161, 8.507059e+37
  %v163 = vand.u32 %v137, 2147483648
  %v164 = vor.u32 1.1754944e-38, %v163
  %v165 = vsel %vm162, %v164, %v160
  %v166 = vmul.f32 %v126, %v151
  %v167 = vmul.f32 %v128, %v165
  %v168 = vmul.f32 %v166, %v121
  %v169 = vmul.f32 %v167, %v122
  %v170 = vsel %vm129, %v168, 0.0
  %171 = vadd.xlane.f32.xlu0 %v170
  %v172 = vpop.xlane.xlu0 %171
  %v173 = vsel %vm129, %v169, 0.0
  %174 = vadd.xlane.f32.xlu0 %v173
  %v175 = vpop.xlane.xlu0 %174
  %176 = vst.msk [vmem:[%s5] sm:$0xff] %vm129, %v126
  %177 = vst.msk [vmem:[%s5 + $0x8] sm:$0xff] %vm129, %v128
  %180 = vrot.lane.b32.xlu0 %v166, 8
  %v181 = vpop.permute.xlu0 %180
  %182 = vrot.lane.b32.xlu0 %v167, 8
  %v183 = vpop.permute.xlu0 %182
  %vm186 = vcmask 130112
  %187 = vst.msk [vmem:[%s5] sm:$0xff] %vm186, %v181
  %188 = vst.msk [vmem:[%s5 + $0x8] sm:$0xff] %vm186, %v183
  %vm189 = vcmask 138368
  %190 = vst.msk [vmem:[%s5] sm:$0xff] %vm189, %v172
  %191 = vst.msk [vmem:[%s5 + $0x8] sm:$0xff] %vm189, %v175
  // Predicated region
  $region22: #{anfis_forward.1} parent=0 // pred_check
    _
  $region23: #{anfis_forward.1} parent=0 // pred_check_branch
    %193 = sbr.rel (0) target = $region25
  $region24: #{anfis_forward.1} parent=0 // pred_region
    _
  $region25: #{anfis_forward.1} parent=0 // pred_fallthru
    _
  // Predicated region
  $region26: #{anfis_forward.1} parent=0 // pred_check
    _
  $region27: #{anfis_forward.1} parent=0 // pred_check_branch
    %195 = sbr.rel (0) target = $region29
  $region28: #{anfis_forward.1} parent=0 // pred_region
    _
  $region29: #{anfis_forward.1} parent=0 // pred_fallthru
    _

</llo_original>
